<compile_context>
chip_gen: v7x
topology: tpu7x:2x2x1
jax: 0.10.0
libtpu: 0.0.40
codegen_flags: <defaults>
</compile_context>

<pallas_src>
import jax
import jax.numpy as jnp
from jax.experimental import pallas as pl
from jax.experimental.pallas import tpu as pltpu

X_MEAN = 0.0   # module defaults
X_STD = 1.0

IN_FEATURES = 25   # Layers[-2]
OUT_FEATURES = 1


def _round_up(x, m):
    return (x + m - 1) // m * m


def dnn_kernel(x_ref, w_ref, b_ref, o_ref):
    # x_ref: (TILE_B, F) f32 VMEM  -- native row-major batch tile
    # w_ref: (1, F)      f32 VMEM  -- effective weights (normalization folded), resident
    # b_ref: (1, 1)      f32 SMEM  -- effective bias (scalar)
    # o_ref: (TILE_B, 1) f32 VMEM
    prod = x_ref[...] * w_ref[...]                    # VPU: w sublane-broadcast over rows
    y = jnp.sum(prod, axis=-1, keepdims=True)         # XLU lane reduce -> (TILE_B, 1)
    o_ref[...] = jnp.maximum(y + b_ref[0, 0], 0.0)    # bias + ReLU


def dnn_forward(x, w, b, x_mean=X_MEAN, x_std=X_STD, tile_b=8192):
    """relu(((x - mean)/std) @ w.T + b) for DNN(Layers=[25, 16]).

    x: (B, 25) f32; w: (1, 25) f32; b: (1,) f32  ->  (B, 1) f32.
    x_mean / x_std may be scalars or per-feature (25,) vectors.
    """
    B, F = x.shape
    x = x.astype(jnp.float32)
    w = jnp.asarray(w, jnp.float32).reshape(OUT_FEATURES, F)
    b = jnp.asarray(b, jnp.float32).reshape(OUT_FEATURES)
    x_mean = jnp.asarray(x_mean, jnp.float32)
    x_std = jnp.asarray(x_std, jnp.float32)   # note: x_std == 0 -> inf, same as PyTorch

    # Fold normalization into the parameters (exact for scalar or per-feature m/s):
    #   ((x - m)/s) @ W.T + b  ==  x @ (W/s).T + (b - sum_j W_j * m_j / s_j)
    w_eff = w / x_std                                                    # (1, F)
    b_eff = (b - jnp.sum(w * (x_mean / x_std), axis=-1)).reshape(1, 1)   # (1, 1)

    # Batch tiling: second-minor block dim must be a multiple of 8; last partial
    # block is handled by Pallas (OOB reads are per-row garbage, OOB writes dropped).
    tile_b = max(8, min(_round_up(tile_b, 8), _round_up(B, 8)))
    n_steps = pl.cdiv(B, tile_b)

    # VMEM budget: x and out tiles are lane-padded to 128 lanes in VMEM
    # (512 B/row each), double-buffered, plus working-set slack.
    row_bytes_vmem = 128 * 4
    buf_bytes = tile_b * row_bytes_vmem
    vmem_need = 5 * buf_bytes + (2 << 20)
    vmem_limit = int(min(max(vmem_need, 32 << 20), 48 << 20))  # safe on v5e/v6e/v7x

    out = pl.pallas_call(
        dnn_kernel,
        out_shape=jax.ShapeDtypeStruct((B, OUT_FEATURES), jnp.float32),
        grid=(n_steps,),
        in_specs=[
            pl.BlockSpec((tile_b, F), lambda i: (i, 0)),           # x tile (native layout)
            pl.BlockSpec((OUT_FEATURES, F), lambda i: (0, 0)),     # weights, VMEM-resident
            pl.BlockSpec(memory_space=pltpu.MemorySpace.SMEM),     # bias scalar
        ],
        out_specs=pl.BlockSpec((tile_b, OUT_FEATURES), lambda i: (i, 0)),
        compiler_params=pltpu.CompilerParams(
            dimension_semantics=("parallel",),
            vmem_limit_bytes=vmem_limit,
        ),
        cost_estimate=pl.CostEstimate(
            flops=2 * B * F,
            transcendentals=0,
            bytes_accessed=4 * (B * F + B + F),
        ),
    )(x, w_eff, b_eff)

    return out                                                      # (B, 1)


if __name__ == "__main__":
    key = jax.random.PRNGKey(0)
    k_x, k_w, k_b = jax.random.split(key, 3)

    # Small shapes; B=1000 exercises both the single-block path and (below)
    # a multi-step grid with a partial tail block.
    B = 1000
    x = jax.random.normal(k_x, (B, IN_FEATURES), dtype=jnp.float32)

    # nn.Linear(25, 1) default init: U(-1/sqrt(fan_in), 1/sqrt(fan_in)).
    bound = 1.0 / (IN_FEATURES ** 0.5)
    w = jax.random.uniform(k_w, (OUT_FEATURES, IN_FEATURES),
                           minval=-bound, maxval=bound, dtype=jnp.float32)
    b = jax.random.uniform(k_b, (OUT_FEATURES,),
                           minval=-bound, maxval=bound, dtype=jnp.float32)

    # Reference in plain JAX (original, unfolded formulation).
    ref = jnp.maximum(((x - X_MEAN) / X_STD) @ w.T + b, 0.0)

    # 1) Default tile size (clamps to the batch -> single block).
    out = dnn_forward(x, w, b, x_mean=X_MEAN, x_std=X_STD)
    jax.block_until_ready(out)
    assert out.shape == (B, OUT_FEATURES)
    assert jnp.allclose(out, ref, atol=1e-5, rtol=1e-5)

    # 2) Tiny tile purely to exercise the multi-step grid + partial tail block
    #    (production default stays at tile_b=8192).
    out_multi = dnn_forward(x, w, b, tile_b=256)
    jax.block_until_ready(out_multi)
    assert jnp.allclose(out_multi, ref, atol=1e-5, rtol=1e-5)

    # 3) Per-feature normalization (generalized fold) correctness check.
    x_mean_v = jnp.linspace(-0.3, 0.3, IN_FEATURES, dtype=jnp.float32)
    x_std_v = jnp.linspace(0.5, 1.5, IN_FEATURES, dtype=jnp.float32)
    ref_norm = jnp.maximum(((x - x_mean_v) / x_std_v) @ w.T + b, 0.0)
    out_norm = dnn_forward(x, w, b, x_mean=x_mean_v, x_std=x_std_v)
    jax.block_until_ready(out_norm)
    assert jnp.allclose(out_norm, ref_norm, atol=1e-5, rtol=1e-5)

    print("KERNEL_OK")
</pallas_src>

<mosaic_0001>
module attributes {stable_mosaic.version = 11 : i64} {
  func.func @dnn_kernel(%arg0: i32, %arg1: memref<1000x25xf32, #tpu.memory_space<vmem>>, %arg2: memref<1x25xf32, #tpu.memory_space<vmem>>, %arg3: memref<1x1xf32, #tpu.memory_space<smem>>, %arg4: memref<1000x1xf32, #tpu.memory_space<vmem>>) attributes {dimension_semantics = [#tpu.dimension_semantics<parallel>], iteration_bounds = array<i64: 1>, scalar_prefetch = 0 : i64, scratch_operands = 0 : i64, tpu.core_type = #tpu.core_type<tc>, window_params = [{transform_indices = @transform_0, window_bounds = array<i64: 1000, 25>}, {pipeline_mode = #tpu.pipeline_mode<synchronous>, transform_indices = @transform_1, window_bounds = array<i64: 1, 25>}, {transform_indices = @transform_2, window_bounds = array<i64: 1, 1>}, {transform_indices = @transform_3, window_bounds = array<i64: 1000, 1>}]} {
    %c0 = arith.constant 0 : index
    %c0_0 = arith.constant 0 : index
    %0 = vector.load %arg1[%c0, %c0_0] : memref<1000x25xf32, #tpu.memory_space<vmem>>, vector<1000x25xf32>
    %c0_1 = arith.constant 0 : index
    %c0_2 = arith.constant 0 : index
    %1 = vector.load %arg2[%c0_1, %c0_2] : memref<1x25xf32, #tpu.memory_space<vmem>>, vector<1x25xf32>
    %2 = vector.broadcast %1 : vector<1x25xf32> to vector<1000x25xf32>
    %3 = arith.mulf %0, %2 : vector<1000x25xf32>
    %cst = arith.constant dense<0.000000e+00> : vector<1000xf32>
    %4 = vector.multi_reduction <add>, %3, %cst [1] : vector<1000x25xf32> to vector<1000xf32>
    %5 = vector.shape_cast %4 : vector<1000xf32> to vector<1000x1xf32>
    %c0_3 = arith.constant 0 : index
    %c0_4 = arith.constant 0 : index
    %6 = memref.load %arg3[%c0_3, %c0_4] : memref<1x1xf32, #tpu.memory_space<smem>>
    %7 = vector.broadcast %6 : f32 to vector<1000x1xf32>
    %8 = arith.addf %5, %7 : vector<1000x1xf32>
    %cst_5 = arith.constant 0.000000e+00 : f32
    %9 = vector.broadcast %cst_5 : f32 to vector<1000x1xf32>
    %10 = arith.maximumf %8, %9 : vector<1000x1xf32>
    %c0_6 = arith.constant 0 : index
    %c0_7 = arith.constant 0 : index
    %11 = vector.load %arg4[%c0_6, %c0_7] : memref<1000x1xf32, #tpu.memory_space<vmem>>, vector<1000x1xf32>
    tpu.vector_store %arg4[%c0_6, %c0_7], %10 {strides = array<i32>} : memref<1000x1xf32, #tpu.memory_space<vmem>>, vector<1000x1xf32>,
    return
  }
  func.func @transform_0(%arg0: i32) -> (i32, i32) {
    %c0_i32 = arith.constant 0 : i32
    %c0_i32_0 = arith.constant 0 : i32
    return %arg0, %c0_i32 : i32, i32
  }
  func.func @transform_1(%arg0: i32) -> (i32, i32) {
    %c0_i32 = arith.constant 0 : i32
    %c0_i32_0 = arith.constant 0 : i32
    %c0_i32_1 = arith.constant 0 : i32
    return %c0_i32, %c0_i32_0 : i32, i32
  }
  func.func @transform_2(%arg0: i32) -> (i32, i32) {
    %c0_i32 = arith.constant 0 : i32
    %c0_i32_0 = arith.constant 0 : i32
    %c0_i32_1 = arith.constant 0 : i32
    return %c0_i32, %c0_i32_0 : i32, i32
  }
  func.func @transform_3(%arg0: i32) -> (i32, i32) {
    %c0_i32 = arith.constant 0 : i32
    %c0_i32_0 = arith.constant 0 : i32
    return %arg0, %c0_i32 : i32, i32
  }
}

</mosaic_0001>

<llo_original>
// kernel: tpu_custom_call.1
$region0: #{tpu_custom_call.1}
  #allocation0 [shape = 'u32[]', space=smem, size = 0x4, offset = 0x4, fixed_abs, tag = 'smem constant byte address 0x4 - core index']
  #allocation1 [shape = 'u32[144,128]{1,0:T(1,128)}', space=vmem, size = 0x12000, scoped, tag = 'internal scratch']
  #allocation2 [shape = 'f32[1,1]{1,0:T(1,128)S(6)}', space=smem, size = 0x200, scoped, tag = 'scoped memory for tpu_custom_call.1']
  %s0 = inlined_call_operand.vmem [shape: f32[1000,25], index: 0, kind: input, shape index: {}]
  %s1 = inlined_call_operand.vmem [shape: f32[1,25], index: 1, kind: input, shape index: {}]
  %s2 = inlined_call_operand.<no memory space> [shape: f32[1,1], index: 2, kind: input, shape index: {}]
  %s3 = inlined_call_operand.vmem [shape: f32[1000,1], index: 3, kind: output, shape index: {}]
  %s4 = sld [smem:[#allocation0]]
  $region22: #{tpu_custom_call.1} parent=0
    _
  %s6 = ssub.s32 1, %s4
  %s7 = scalar_select 0, %s6, %s4
  %8 = sst [smem:[#allocation2]] %s2
  // Predicated region
  $region2: #{tpu_custom_call.1} parent=0 // pred_check
    _
  $region3: #{tpu_custom_call.1} parent=0 // pred_check_branch
    %10 = sbr.rel (0) target = $region5
  $region4: #{tpu_custom_call.1} parent=0 // pred_region
    _
  $region5: #{tpu_custom_call.1} parent=0 // pred_fallthru
    _
  // Predicated region
  $region6: #{tpu_custom_call.1} parent=0 // pred_check
    _
  $region7: #{tpu_custom_call.1} parent=0 // pred_check_branch
    %12 = sbr.rel (0) target = $region9
  $region8: #{tpu_custom_call.1} parent=0 // pred_region
    _
  $region9: #{tpu_custom_call.1} parent=0 // pred_fallthru
    _
  // Predicated region
  $region10: #{tpu_custom_call.1} parent=0 // pred_check
    _
  $region11: #{tpu_custom_call.1} parent=0 // pred_check_branch
    %14 = sbr.rel (0) target = $region13
  $region12: #{tpu_custom_call.1} parent=0 // pred_region
    _
  $region13: #{tpu_custom_call.1} parent=0 // pred_fallthru
    _
  %v15 = vld [vmem:[%s0] sm:$0xff]
  %v16 = vld [vmem:[%s0 + $0x8] sm:$0xff]
  %v17 = vld [vmem:[%s0 + $0x10] sm:$0xff]
  %v18 = vld [vmem:[%s0 + $0x18] sm:$0xff]
  %v19 = vld [vmem:[%s0 + $0x20] sm:$0xff]
  %v20 = vld [vmem:[%s0 + $0x28] sm:$0xff]
  %v21 = vld [vmem:[%s0 + $0x30] sm:$0xff]
  %v22 = vld [vmem:[%s0 + $0x38] sm:$0xff]
  %v23 = vld [vmem:[%s0 + $0x40] sm:$0xff]
  %v24 = vld [vmem:[%s0 + $0x48] sm:$0xff]
  %v25 = vld [vmem:[%s0 + $0x50] sm:$0xff]
  %v26 = vld [vmem:[%s0 + $0x58] sm:$0xff]
  %v27 = vld [vmem:[%s0 + $0x60] sm:$0xff]
  %v28 = vld [vmem:[%s0 + $0x68] sm:$0xff]
  %v29 = vld [vmem:[%s0 + $0x70] sm:$0xff]
  %v30 = vld [vmem:[%s0 + $0x78] sm:$0xff]
  %v31 = vld [vmem:[%s0 + $0x80] sm:$0xff]
  %v32 = vld [vmem:[%s0 + $0x88] sm:$0xff]
  %v33 = vld [vmem:[%s0 + $0x90] sm:$0xff]
  %v34 = vld [vmem:[%s0 + $0x98] sm:$0xff]
  %v35 = vld [vmem:[%s0 + $0xa0] sm:$0xff]
  %v36 = vld [vmem:[%s0 + $0xa8] sm:$0xff]
  %v37 = vld [vmem:[%s0 + $0xb0] sm:$0xff]
  %v38 = vld [vmem:[%s0 + $0xb8] sm:$0xff]
  %v39 = vld [vmem:[%s0 + $0xc0] sm:$0xff]
  %v40 = vld [vmem:[%s0 + $0xc8] sm:$0xff]
  %v41 = vld [vmem:[%s0 + $0xd0] sm:$0xff]
  %v42 = vld [vmem:[%s0 + $0xd8] sm:$0xff]
  %v43 = vld [vmem:[%s0 + $0xe0] sm:$0xff]
  %v44 = vld [vmem:[%s0 + $0xe8] sm:$0xff]
  %v45 = vld [vmem:[%s0 + $0xf0] sm:$0xff]
  %v46 = vld [vmem:[%s0 + $0xf8] sm:$0xff]
  %v47 = vld [vmem:[%s0 + $0x100] sm:$0xff]
  %v48 = vld [vmem:[%s0 + $0x108] sm:$0xff]
  %v49 = vld [vmem:[%s0 + $0x110] sm:$0xff]
  %v50 = vld [vmem:[%s0 + $0x118] sm:$0xff]
  %v51 = vld [vmem:[%s0 + $0x120] sm:$0xff]
  %v52 = vld [vmem:[%s0 + $0x128] sm:$0xff]
  %v53 = vld [vmem:[%s0 + $0x130] sm:$0xff]
  %v54 = vld [vmem:[%s0 + $0x138] sm:$0xff]
  %v55 = vld [vmem:[%s0 + $0x140] sm:$0xff]
  %v56 = vld [vmem:[%s0 + $0x148] sm:$0xff]
  %v57 = vld [vmem:[%s0 + $0x150] sm:$0xff]
  %v58 = vld [vmem:[%s0 + $0x158] sm:$0xff]
  %v59 = vld [vmem:[%s0 + $0x160] sm:$0xff]
  %v60 = vld [vmem:[%s0 + $0x168] sm:$0xff]
  %v61 = vld [vmem:[%s0 + $0x170] sm:$0xff]
  %v62 = vld [vmem:[%s0 + $0x178] sm:$0xff]
  %v63 = vld [vmem:[%s0 + $0x180] sm:$0xff]
  %v64 = vld [vmem:[%s0 + $0x188] sm:$0xff]
  %v65 = vld [vmem:[%s0 + $0x190] sm:$0xff]
  %v66 = vld [vmem:[%s0 + $0x198] sm:$0xff]
  %v67 = vld [vmem:[%s0 + $0x1a0] sm:$0xff]
  %v68 = vld [vmem:[%s0 + $0x1a8] sm:$0xff]
  %v69 = vld [vmem:[%s0 + $0x1b0] sm:$0xff]
  %v70 = vld [vmem:[%s0 + $0x1b8] sm:$0xff]
  %v71 = vld [vmem:[%s0 + $0x1c0] sm:$0xff]
  %v72 = vld [vmem:[%s0 + $0x1c8] sm:$0xff]
  %v73 = vld [vmem:[%s0 + $0x1d0] sm:$0xff]
  %v74 = vld [vmem:[%s0 + $0x1d8] sm:$0xff]
  %v75 = vld [vmem:[%s0 + $0x1e0] sm:$0xff]
  %v76 = vld [vmem:[%s0 + $0x1e8] sm:$0xff]
  %v77 = vld [vmem:[%s0 + $0x1f0] sm:$0xff]
  %v78 = vld [vmem:[%s0 + $0x1f8] sm:$0xff]
  %v79 = vld [vmem:[%s0 + $0x200] sm:$0xff]
  %v80 = vld [vmem:[%s0 + $0x208] sm:$0xff]
  %v81 = vld [vmem:[%s0 + $0x210] sm:$0xff]
  %v82 = vld [vmem:[%s0 + $0x218] sm:$0xff]
  %v83 = vld [vmem:[%s0 + $0x220] sm:$0xff]
  %v84 = vld [vmem:[%s0 + $0x228] sm:$0xff]
  %v85 = vld [vmem:[%s0 + $0x230] sm:$0xff]
  %v86 = vld [vmem:[%s0 + $0x238] sm:$0xff]
  %v87 = vld [vmem:[%s0 + $0x240] sm:$0xff]
  %v88 = vld [vmem:[%s0 + $0x248] sm:$0xff]
  %v89 = vld [vmem:[%s0 + $0x250] sm:$0xff]
  %v90 = vld [vmem:[%s0 + $0x258] sm:$0xff]
  %v91 = vld [vmem:[%s0 + $0x260] sm:$0xff]
  %v92 = vld [vmem:[%s0 + $0x268] sm:$0xff]
  %v93 = vld [vmem:[%s0 + $0x270] sm:$0xff]
  %v94 = vld [vmem:[%s0 + $0x278] sm:$0xff]
  %v95 = vld [vmem:[%s0 + $0x280] sm:$0xff]
  %v96 = vld [vmem:[%s0 + $0x288] sm:$0xff]
  %v97 = vld [vmem:[%s0 + $0x290] sm:$0xff]
  %v98 = vld [vmem:[%s0 + $0x298] sm:$0xff]
  %v99 = vld [vmem:[%s0 + $0x2a0] sm:$0xff]
  %v100 = vld [vmem:[%s0 + $0x2a8] sm:$0xff]
  %v101 = vld [vmem:[%s0 + $0x2b0] sm:$0xff]
  %v102 = vld [vmem:[%s0 + $0x2b8] sm:$0xff]
  %v103 = vld [vmem:[%s0 + $0x2c0] sm:$0xff]
  %v104 = vld [vmem:[%s0 + $0x2c8] sm:$0xff]
  %v105 = vld [vmem:[%s0 + $0x2d0] sm:$0xff]
  %v106 = vld [vmem:[%s0 + $0x2d8] sm:$0xff]
  %v107 = vld [vmem:[%s0 + $0x2e0] sm:$0xff]
  %v108 = vld [vmem:[%s0 + $0x2e8] sm:$0xff]
  %v109 = vld [vmem:[%s0 + $0x2f0] sm:$0xff]
  %v110 = vld [vmem:[%s0 + $0x2f8] sm:$0xff]
  %v111 = vld [vmem:[%s0 + $0x300] sm:$0xff]
  %v112 = vld [vmem:[%s0 + $0x308] sm:$0xff]
  %v113 = vld [vmem:[%s0 + $0x310] sm:$0xff]
  %v114 = vld [vmem:[%s0 + $0x318] sm:$0xff]
  %v115 = vld [vmem:[%s0 + $0x320] sm:$0xff]
  %v116 = vld [vmem:[%s0 + $0x328] sm:$0xff]
  %v117 = vld [vmem:[%s0 + $0x330] sm:$0xff]
  %v118 = vld [vmem:[%s0 + $0x338] sm:$0xff]
  %v119 = vld [vmem:[%s0 + $0x340] sm:$0xff]
  %v120 = vld [vmem:[%s0 + $0x348] sm:$0xff]
  %v121 = vld [vmem:[%s0 + $0x350] sm:$0xff]
  %v122 = vld [vmem:[%s0 + $0x358] sm:$0xff]
  %v123 = vld [vmem:[%s0 + $0x360] sm:$0xff]
  %v124 = vld [vmem:[%s0 + $0x368] sm:$0xff]
  %v125 = vld [vmem:[%s0 + $0x370] sm:$0xff]
  %v126 = vld [vmem:[%s0 + $0x378] sm:$0xff]
  %v127 = vld [vmem:[%s0 + $0x380] sm:$0xff]
  %v128 = vld [vmem:[%s0 + $0x388] sm:$0xff]
  %v129 = vld [vmem:[%s0 + $0x390] sm:$0xff]
  %v130 = vld [vmem:[%s0 + $0x398] sm:$0xff]
  %v131 = vld [vmem:[%s0 + $0x3a0] sm:$0xff]
  %v132 = vld [vmem:[%s0 + $0x3a8] sm:$0xff]
  %v133 = vld [vmem:[%s0 + $0x3b0] sm:$0xff]
  %v134 = vld [vmem:[%s0 + $0x3b8] sm:$0xff]
  %v135 = vld [vmem:[%s0 + $0x3c0] sm:$0xff]
  %v136 = vld [vmem:[%s0 + $0x3c8] sm:$0xff]
  %v137 = vld [vmem:[%s0 + $0x3d0] sm:$0xff]
  %v138 = vld [vmem:[%s0 + $0x3d8] sm:$0xff]
  %v139 = vld [vmem:[%s0 + $0x3e0] sm:$0xff]
  %v140 = vld [vmem:[%s1] sm:$0x1]
  %v142 = vlaneseq
  %v143 = vshrl.u32 %v142, 7
  %v144 = vsub.s32 0, %v143
  %v145 = vrot.slane %v140, %v144
  %v147 = vmul.f32 %v15, %v145
  %v148 = vmul.f32 %v16, %v145
  %v149 = vmul.f32 %v17, %v145
  %v150 = vmul.f32 %v18, %v145
  %v151 = vmul.f32 %v19, %v145
  %v152 = vmul.f32 %v20, %v145
  %v153 = vmul.f32 %v21, %v145
  %v154 = vmul.f32 %v22, %v145
  %v155 = vmul.f32 %v23, %v145
  %v156 = vmul.f32 %v24, %v145
  %v157 = vmul.f32 %v25, %v145
  %v158 = vmul.f32 %v26, %v145
  %v159 = vmul.f32 %v27, %v145
  %v160 = vmul.f32 %v28, %v145
  %v161 = vmul.f32 %v29, %v145
  %v162 = vmul.f32 %v30, %v145
  %v163 = vmul.f32 %v31, %v145
  %v164 = vmul.f32 %v32, %v145
  %v165 = vmul.f32 %v33, %v145
  %v166 = vmul.f32 %v34, %v145
  %v167 = vmul.f32 %v35, %v145
  %v168 = vmul.f32 %v36, %v145
  %v169 = vmul.f32 %v37, %v145
  %v170 = vmul.f32 %v38, %v145
  %v171 = vmul.f32 %v39, %v145
  %v172 = vmul.f32 %v40, %v145
  %v173 = vmul.f32 %v41, %v145
  %v174 = vmul.f32 %v42, %v145
  %v175 = vmul.f32 %v43, %v145
  %v176 = vmul.f32 %v44, %v145
  %v177 = vmul.f32 %v45, %v145
  %v178 = vmul.f32 %v46, %v145
  %v179 = vmul.f32 %v47, %v145
  %v180 = vmul.f32 %v48, %v145
  %v181 = vmul.f32 %v49, %v145
  %v182 = vmul.f32 %v50, %v145
  %v183 = vmul.f32 %v51, %v145
  %v184 = vmul.f32 %v52, %v145
  %v185 = vmul.f32 %v53, %v145
  %v186 = vmul.f32 %v54, %v145
  %v187 = vmul.f32 %v55, %v145
  %v188 = vmul.f32 %v56, %v145
  %v189 = vmul.f32 %v57, %v145
  %v190 = vmul.f32 %v58, %v145
  %v191 = vmul.f32 %v59, %v145
  %v192 = vmul.f32 %v60, %v145
  %v193 = vmul.f32 %v61, %v145
  %v194 = vmul.f32 %v62, %v145
  %v195 = vmul.f32 %v63, %v145
  %v196 = vmul.f32 %v64, %v145
  %v197 = vmul.f32 %v65, %v145
  %v198 = vmul.f32 %v66, %v145
  %v199 = vmul.f32 %v67, %v145
  %v200 = vmul.f32 %v68, %v145
  %v201 = vmul.f32 %v69, %v145
  %v202 = vmul.f32 %v70, %v145
  %v203 = vmul.f32 %v71, %v145
  %v204 = vmul.f32 %v72, %v145
  %v205 = vmul.f32 %v73, %v145
  %v206 = vmul.f32 %v74, %v145
  %v207 = vmul.f32 %v75, %v145
  %v208 = vmul.f32 %v76, %v145
  %v209 = vmul.f32 %v77, %v145
  %v210 = vmul.f32 %v78, %v145
  %v211 = vmul.f32 %v79, %v145
  %v212 = vmul.f32 %v80, %v145
  %v213 = vmul.f32 %v81, %v145
  %v214 = vmul.f32 %v82, %v145
  %v215 = vmul.f32 %v83, %v145
  %v216 = vmul.f32 %v84, %v145
  %v217 = vmul.f32 %v85, %v145
  %v218 = vmul.f32 %v86, %v145
  %v219 = vmul.f32 %v87, %v145
  %v220 = vmul.f32 %v88, %v145
  %v221 = vmul.f32 %v89, %v145
  %v222 = vmul.f32 %v90, %v145
  %v223 = vmul.f32 %v91, %v145
  %v224 = vmul.f32 %v92, %v145
  %v225 = vmul.f32 %v93, %v145
  %v226 = vmul.f32 %v94, %v145
  %v227 = vmul.f32 %v95, %v145
  %v228 = vmul.f32 %v96, %v145
  %v229 = vmul.f32 %v97, %v145
  %v230 = vmul.f32 %v98, %v145
  %v231 = vmul.f32 %v99, %v145
  %v232 = vmul.f32 %v100, %v145
  %v233 = vmul.f32 %v101, %v145
  %v234 = vmul.f32 %v102, %v145
  %v235 = vmul.f32 %v103, %v145
  %v236 = vmul.f32 %v104, %v145
  %v237 = vmul.f32 %v105, %v145
  %v238 = vmul.f32 %v106, %v145
  %v239 = vmul.f32 %v107, %v145
  %v240 = vmul.f32 %v108, %v145
  %v241 = vmul.f32 %v109, %v145
  %v242 = vmul.f32 %v110, %v145
  %v243 = vmul.f32 %v111, %v145
  %v244 = vmul.f32 %v112, %v145
  %v245 = vmul.f32 %v113, %v145
  %v246 = vmul.f32 %v114, %v145
  %v247 = vmul.f32 %v115, %v145
  %v248 = vmul.f32 %v116, %v145
  %v249 = vmul.f32 %v117, %v145
  %v250 = vmul.f32 %v118, %v145
  %v251 = vmul.f32 %v119, %v145
  %v252 = vmul.f32 %v120, %v145
  %v253 = vmul.f32 %v121, %v145
  %v254 = vmul.f32 %v122, %v145
  %v255 = vmul.f32 %v123, %v145
  %v256 = vmul.f32 %v124, %v145
  %v257 = vmul.f32 %v125, %v145
  %v258 = vmul.f32 %v126, %v145
  %v259 = vmul.f32 %v127, %v145
  %v260 = vmul.f32 %v128, %v145
  %v261 = vmul.f32 %v129, %v145
  %v262 = vmul.f32 %v130, %v145
  %v263 = vmul.f32 %v131, %v145
  %v264 = vmul.f32 %v132, %v145
  %v265 = vmul.f32 %v133, %v145
  %v266 = vmul.f32 %v134, %v145
  %v267 = vmul.f32 %v135, %v145
  %v268 = vmul.f32 %v136, %v145
  %v269 = vmul.f32 %v137, %v145
  %v270 = vmul.f32 %v138, %v145
  %v271 = vmul.f32 %v139, %v145
  %vm272 = vcmask 203776
  %v273 = vsel %vm272, %v147, 0.0
  %274 = vadd.xlane.f32.xlu0 %v273
  %v275 = vpop.xlane.xlu0 %274
  %v276 = vsel %vm272, %v148, 0.0
  %277 = vadd.xlane.f32.xlu0 %v276
  %v278 = vpop.xlane.xlu0 %277
  %v279 = vsel %vm272, %v149, 0.0
  %280 = vadd.xlane.f32.xlu0 %v279
  %v281 = vpop.xlane.xlu0 %280
  %v282 = vsel %vm272, %v150, 0.0
  %283 = vadd.xlane.f32.xlu0 %v282
  %v284 = vpop.xlane.xlu0 %283
  %v285 = vsel %vm272, %v151, 0.0
  %286 = vadd.xlane.f32.xlu0 %v285
  %v287 = vpop.xlane.xlu0 %286
  %v288 = vsel %vm272, %v152, 0.0
  %289 = vadd.xlane.f32.xlu0 %v288
  %v290 = vpop.xlane.xlu0 %289
  %v291 = vsel %vm272, %v153, 0.0
  %292 = vadd.xlane.f32.xlu0 %v291
  %v293 = vpop.xlane.xlu0 %292
  %v294 = vsel %vm272, %v154, 0.0
  %295 = vadd.xlane.f32.xlu0 %v294
  %v296 = vpop.xlane.xlu0 %295
  %v297 = vsel %vm272, %v155, 0.0
  %298 = vadd.xlane.f32.xlu0 %v297
  %v299 = vpop.xlane.xlu0 %298
  %v300 = vsel %vm272, %v156, 0.0
  %301 = vadd.xlane.f32.xlu0 %v300
  %v302 = vpop.xlane.xlu0 %301
  %v303 = vsel %vm272, %v157, 0.0
  %304 = vadd.xlane.f32.xlu0 %v303
  %v305 = vpop.xlane.xlu0 %304
  %v306 = vsel %vm272, %v158, 0.0
  %307 = vadd.xlane.f32.xlu0 %v306
  %v308 = vpop.xlane.xlu0 %307
  %v309 = vsel %vm272, %v159, 0.0
  %310 = vadd.xlane.f32.xlu0 %v309
  %v311 = vpop.xlane.xlu0 %310
  %v312 = vsel %vm272, %v160, 0.0
  %313 = vadd.xlane.f32.xlu0 %v312
  %v314 = vpop.xlane.xlu0 %313
  %v315 = vsel %vm272, %v161, 0.0
  %316 = vadd.xlane.f32.xlu0 %v315
  %v317 = vpop.xlane.xlu0 %316
  %v318 = vsel %vm272, %v162, 0.0
  %319 = vadd.xlane.f32.xlu0 %v318
  %v320 = vpop.xlane.xlu0 %319
  %v321 = vsel %vm272, %v163, 0.0
  %322 = vadd.xlane.f32.xlu0 %v321
  %v323 = vpop.xlane.xlu0 %322
  %v324 = vsel %vm272, %v164, 0.0
  %325 = vadd.xlane.f32.xlu0 %v324
  %v326 = vpop.xlane.xlu0 %325
  %v327 = vsel %vm272, %v165, 0.0
  %328 = vadd.xlane.f32.xlu0 %v327
  %v329 = vpop.xlane.xlu0 %328
  %v330 = vsel %vm272, %v166, 0.0
  %331 = vadd.xlane.f32.xlu0 %v330
  %v332 = vpop.xlane.xlu0 %331
  %v333 = vsel %vm272, %v167, 0.0
  %334 = vadd.xlane.f32.xlu0 %v333
  %v335 = vpop.xlane.xlu0 %334
  %v336 = vsel %vm272, %v168, 0.0
  %337 = vadd.xlane.f32.xlu0 %v336
  %v338 = vpop.xlane.xlu0 %337
  %v339 = vsel %vm272, %v169, 0.0
  %340 = vadd.xlane.f32.xlu0 %v339
  %v341 = vpop.xlane.xlu0 %340
  %v342 = vsel %vm272, %v170, 0.0
  %343 = vadd.xlane.f32.xlu0 %v342
  %v344 = vpop.xlane.xlu0 %343
  %v345 = vsel %vm272, %v171, 0.0
  %346 = vadd.xlane.f32.xlu0 %v345
  %v347 = vpop.xlane.xlu0 %346
  %v348 = vsel %vm272, %v172, 0.0
  %349 = vadd.xlane.f32.xlu0 %v348
  %v350 = vpop.xlane.xlu0 %349
  %v351 = vsel %vm272, %v173, 0.0
  %352 = vadd.xlane.f32.xlu0 %v351
  %v353 = vpop.xlane.xlu0 %352
  %v354 = vsel %vm272, %v174, 0.0
  %355 = vadd.xlane.f32.xlu0 %v354
  %v356 = vpop.xlane.xlu0 %355
  %v357 = vsel %vm272, %v175, 0.0
  %358 = vadd.xlane.f32.xlu0 %v357
  %v359 = vpop.xlane.xlu0 %358
  %v360 = vsel %vm272, %v176, 0.0
  %361 = vadd.xlane.f32.xlu0 %v360
  %v362 = vpop.xlane.xlu0 %361
  %v363 = vsel %vm272, %v177, 0.0
  %364 = vadd.xlane.f32.xlu0 %v363
  %v365 = vpop.xlane.xlu0 %364
  %v366 = vsel %vm272, %v178, 0.0
  %367 = vadd.xlane.f32.xlu0 %v366
  %v368 = vpop.xlane.xlu0 %367
  %v369 = vsel %vm272, %v179, 0.0
  %370 = vadd.xlane.f32.xlu0 %v369
  %v371 = vpop.xlane.xlu0 %370
  %v372 = vsel %vm272, %v180, 0.0
  %373 = vadd.xlane.f32.xlu0 %v372
  %v374 = vpop.xlane.xlu0 %373
  %v375 = vsel %vm272, %v181, 0.0
  %376 = vadd.xlane.f32.xlu0 %v375
  %v377 = vpop.xlane.xlu0 %376
  %v378 = vsel %vm272, %v182, 0.0
  %379 = vadd.xlane.f32.xlu0 %v378
  %v380 = vpop.xlane.xlu0 %379
  %v381 = vsel %vm272, %v183, 0.0
  %382 = vadd.xlane.f32.xlu0 %v381
  %v383 = vpop.xlane.xlu0 %382
  %v384 = vsel %vm272, %v184, 0.0
  %385 = vadd.xlane.f32.xlu0 %v384
  %v386 = vpop.xlane.xlu0 %385
  %v387 = vsel %vm272, %v185, 0.0
  %388 = vadd.xlane.f32.xlu0 %v387
  %v389 = vpop.xlane.xlu0 %388
  %v390 = vsel %vm272, %v186, 0.0
  %391 = vadd.xlane.f32.xlu0 %v390
  %v392 = vpop.xlane.xlu0 %391
  %v393 = vsel %vm272, %v187, 0.0
  %394 = vadd.xlane.f32.xlu0 %v393
  %v395 = vpop.xlane.xlu0 %394
  %v396 = vsel %vm272, %v188, 0.0
  %397 = vadd.xlane.f32.xlu0 %v396
  %v398 = vpop.xlane.xlu0 %397
  %v399 = vsel %vm272, %v189, 0.0
  %400 = vadd.xlane.f32.xlu0 %v399
  %v401 = vpop.xlane.xlu0 %400
  %v402 = vsel %vm272, %v190, 0.0
  %403 = vadd.xlane.f32.xlu0 %v402
  %v404 = vpop.xlane.xlu0 %403
  %v405 = vsel %vm272, %v191, 0.0
  %406 = vadd.xlane.f32.xlu0 %v405
  %v407 = vpop.xlane.xlu0 %406
  %v408 = vsel %vm272, %v192, 0.0
  %409 = vadd.xlane.f32.xlu0 %v408
  %v410 = vpop.xlane.xlu0 %409
  %v411 = vsel %vm272, %v193, 0.0
  %412 = vadd.xlane.f32.xlu0 %v411
  %v413 = vpop.xlane.xlu0 %412
  %v414 = vsel %vm272, %v194, 0.0
  %415 = vadd.xlane.f32.xlu0 %v414
  %v416 = vpop.xlane.xlu0 %415
  %v417 = vsel %vm272, %v195, 0.0
  %418 = vadd.xlane.f32.xlu0 %v417
  %v419 = vpop.xlane.xlu0 %418
  %v420 = vsel %vm272, %v196, 0.0
  %421 = vadd.xlane.f32.xlu0 %v420
  %v422 = vpop.xlane.xlu0 %421
  %v423 = vsel %vm272, %v197, 0.0
  %424 = vadd.xlane.f32.xlu0 %v423
  %v425 = vpop.xlane.xlu0 %424
  %v426 = vsel %vm272, %v198, 0.0
  %427 = vadd.xlane.f32.xlu0 %v426
  %v428 = vpop.xlane.xlu0 %427
  %v429 = vsel %vm272, %v199, 0.0
  %430 = vadd.xlane.f32.xlu0 %v429
  %v431 = vpop.xlane.xlu0 %430
  %v432 = vsel %vm272, %v200, 0.0
  %433 = vadd.xlane.f32.xlu0 %v432
  %v434 = vpop.xlane.xlu0 %433
  %v435 = vsel %vm272, %v201, 0.0
  %436 = vadd.xlane.f32.xlu0 %v435
  %v437 = vpop.xlane.xlu0 %436
  %v438 = vsel %vm272, %v202, 0.0
  %439 = vadd.xlane.f32.xlu0 %v438
  %v440 = vpop.xlane.xlu0 %439
  %v441 = vsel %vm272, %v203, 0.0
  %442 = vadd.xlane.f32.xlu0 %v441
  %v443 = vpop.xlane.xlu0 %442
  %v444 = vsel %vm272, %v204, 0.0
  %445 = vadd.xlane.f32.xlu0 %v444
  %v446 = vpop.xlane.xlu0 %445
  %v447 = vsel %vm272, %v205, 0.0
  %448 = vadd.xlane.f32.xlu0 %v447
  %v449 = vpop.xlane.xlu0 %448
  %v450 = vsel %vm272, %v206, 0.0
  %451 = vadd.xlane.f32.xlu0 %v450
  %v452 = vpop.xlane.xlu0 %451
  %v453 = vsel %vm272, %v207, 0.0
  %454 = vadd.xlane.f32.xlu0 %v453
  %v455 = vpop.xlane.xlu0 %454
  %v456 = vsel %vm272, %v208, 0.0
  %457 = vadd.xlane.f32.xlu0 %v456
  %v458 = vpop.xlane.xlu0 %457
  %v459 = vsel %vm272, %v209, 0.0
  %460 = vadd.xlane.f32.xlu0 %v459
  %v461 = vpop.xlane.xlu0 %460
  %v462 = vsel %vm272, %v210, 0.0
  %463 = vadd.xlane.f32.xlu0 %v462
  %v464 = vpop.xlane.xlu0 %463
  %v465 = vsel %vm272, %v211, 0.0
  %466 = vadd.xlane.f32.xlu0 %v465
  %v467 = vpop.xlane.xlu0 %466
  %v468 = vsel %vm272, %v212, 0.0
  %469 = vadd.xlane.f32.xlu0 %v468
  %v470 = vpop.xlane.xlu0 %469
  %v471 = vsel %vm272, %v213, 0.0
  %472 = vadd.xlane.f32.xlu0 %v471
  %v473 = vpop.xlane.xlu0 %472
  %v474 = vsel %vm272, %v214, 0.0
  %475 = vadd.xlane.f32.xlu0 %v474
  %v476 = vpop.xlane.xlu0 %475
  %v477 = vsel %vm272, %v215, 0.0
  %478 = vadd.xlane.f32.xlu0 %v477
  %v479 = vpop.xlane.xlu0 %478
  %v480 = vsel %vm272, %v216, 0.0
  %481 = vadd.xlane.f32.xlu0 %v480
  %v482 = vpop.xlane.xlu0 %481
  %v483 = vsel %vm272, %v217, 0.0
  %484 = vadd.xlane.f32.xlu0 %v483
  %v485 = vpop.xlane.xlu0 %484
  %v486 = vsel %vm272, %v218, 0.0
  %487 = vadd.xlane.f32.xlu0 %v486
  %v488 = vpop.xlane.xlu0 %487
  %v489 = vsel %vm272, %v219, 0.0
  %490 = vadd.xlane.f32.xlu0 %v489
  %v491 = vpop.xlane.xlu0 %490
  %v492 = vsel %vm272, %v220, 0.0
  %493 = vadd.xlane.f32.xlu0 %v492
  %v494 = vpop.xlane.xlu0 %493
  %v495 = vsel %vm272, %v221, 0.0
  %496 = vadd.xlane.f32.xlu0 %v495
  %v497 = vpop.xlane.xlu0 %496
  %v498 = vsel %vm272, %v222, 0.0
  %499 = vadd.xlane.f32.xlu0 %v498
  %v500 = vpop.xlane.xlu0 %499
  %v501 = vsel %vm272, %v223, 0.0
  %502 = vadd.xlane.f32.xlu0 %v501
  %v503 = vpop.xlane.xlu0 %502
  %v504 = vsel %vm272, %v224, 0.0
  %505 = vadd.xlane.f32.xlu0 %v504
  %v506 = vpop.xlane.xlu0 %505
  %v507 = vsel %vm272, %v225, 0.0
  %508 = vadd.xlane.f32.xlu0 %v507
  %v509 = vpop.xlane.xlu0 %508
  %v510 = vsel %vm272, %v226, 0.0
  %511 = vadd.xlane.f32.xlu0 %v510
  %v512 = vpop.xlane.xlu0 %511
  %v513 = vsel %vm272, %v227, 0.0
  %514 = vadd.xlane.f32.xlu0 %v513
  %v515 = vpop.xlane.xlu0 %514
  %v516 = vsel %vm272, %v228, 0.0
  %517 = vadd.xlane.f32.xlu0 %v516
  %v518 = vpop.xlane.xlu0 %517
  %v519 = vsel %vm272, %v229, 0.0
  %520 = vadd.xlane.f32.xlu0 %v519
  %v521 = vpop.xlane.xlu0 %520
  %v522 = vsel %vm272, %v230, 0.0
  %523 = vadd.xlane.f32.xlu0 %v522
  %v524 = vpop.xlane.xlu0 %523
  %v525 = vsel %vm272, %v231, 0.0
  %526 = vadd.xlane.f32.xlu0 %v525
  %v527 = vpop.xlane.xlu0 %526
  %v528 = vsel %vm272, %v232, 0.0
  %529 = vadd.xlane.f32.xlu0 %v528
  %v530 = vpop.xlane.xlu0 %529
  %v531 = vsel %vm272, %v233, 0.0
  %532 = vadd.xlane.f32.xlu0 %v531
  %v533 = vpop.xlane.xlu0 %532
  %v534 = vsel %vm272, %v234, 0.0
  %535 = vadd.xlane.f32.xlu0 %v534
  %v536 = vpop.xlane.xlu0 %535
  %v537 = vsel %vm272, %v235, 0.0
  %538 = vadd.xlane.f32.xlu0 %v537
  %v539 = vpop.xlane.xlu0 %538
  %v540 = vsel %vm272, %v236, 0.0
  %541 = vadd.xlane.f32.xlu0 %v540
  %v542 = vpop.xlane.xlu0 %541
  %v543 = vsel %vm272, %v237, 0.0
  %544 = vadd.xlane.f32.xlu0 %v543
  %v545 = vpop.xlane.xlu0 %544
  %v546 = vsel %vm272, %v238, 0.0
  %547 = vadd.xlane.f32.xlu0 %v546
  %v548 = vpop.xlane.xlu0 %547
  %v549 = vsel %vm272, %v239, 0.0
  %550 = vadd.xlane.f32.xlu0 %v549
  %v551 = vpop.xlane.xlu0 %550
  %v552 = vsel %vm272, %v240, 0.0
  %553 = vadd.xlane.f32.xlu0 %v552
  %v554 = vpop.xlane.xlu0 %553
  %v555 = vsel %vm272, %v241, 0.0
  %556 = vadd.xlane.f32.xlu0 %v555
  %v557 = vpop.xlane.xlu0 %556
  %v558 = vsel %vm272, %v242, 0.0
  %559 = vadd.xlane.f32.xlu0 %v558
  %v560 = vpop.xlane.xlu0 %559
  %v561 = vsel %vm272, %v243, 0.0
  %562 = vadd.xlane.f32.xlu0 %v561
  %v563 = vpop.xlane.xlu0 %562
  %v564 = vsel %vm272, %v244, 0.0
  %565 = vadd.xlane.f32.xlu0 %v564
  %v566 = vpop.xlane.xlu0 %565
  %v567 = vsel %vm272, %v245, 0.0
  %568 = vadd.xlane.f32.xlu0 %v567
  %v569 = vpop.xlane.xlu0 %568
  %v570 = vsel %vm272, %v246, 0.0
  %571 = vadd.xlane.f32.xlu0 %v570
  %v572 = vpop.xlane.xlu0 %571
  %v573 = vsel %vm272, %v247, 0.0
  %574 = vadd.xlane.f32.xlu0 %v573
  %v575 = vpop.xlane.xlu0 %574
  %v576 = vsel %vm272, %v248, 0.0
  %577 = vadd.xlane.f32.xlu0 %v576
  %v578 = vpop.xlane.xlu0 %577
  %v579 = vsel %vm272, %v249, 0.0
  %580 = vadd.xlane.f32.xlu0 %v579
  %v581 = vpop.xlane.xlu0 %580
  %v582 = vsel %vm272, %v250, 0.0
  %583 = vadd.xlane.f32.xlu0 %v582
  %v584 = vpop.xlane.xlu0 %583
  %v585 = vsel %vm272, %v251, 0.0
  %586 = vadd.xlane.f32.xlu0 %v585
  %v587 = vpop.xlane.xlu0 %586
  %v588 = vsel %vm272, %v252, 0.0
  %589 = vadd.xlane.f32.xlu0 %v588
  %v590 = vpop.xlane.xlu0 %589
  %v591 = vsel %vm272, %v253, 0.0
  %592 = vadd.xlane.f32.xlu0 %v591
  %v593 = vpop.xlane.xlu0 %592
  %v594 = vsel %vm272, %v254, 0.0
  %595 = vadd.xlane.f32.xlu0 %v594
  %v596 = vpop.xlane.xlu0 %595
  %v597 = vsel %vm272, %v255, 0.0
  %598 = vadd.xlane.f32.xlu0 %v597
  %v599 = vpop.xlane.xlu0 %598
  %v600 = vsel %vm272, %v256, 0.0
  %601 = vadd.xlane.f32.xlu0 %v600
  %v602 = vpop.xlane.xlu0 %601
  %v603 = vsel %vm272, %v257, 0.0
  %604 = vadd.xlane.f32.xlu0 %v603
  %v605 = vpop.xlane.xlu0 %604
  %v606 = vsel %vm272, %v258, 0.0
  %607 = vadd.xlane.f32.xlu0 %v606
  %v608 = vpop.xlane.xlu0 %607
  %v609 = vsel %vm272, %v259, 0.0
  %610 = vadd.xlane.f32.xlu0 %v609
  %v611 = vpop.xlane.xlu0 %610
  %v612 = vsel %vm272, %v260, 0.0
  %613 = vadd.xlane.f32.xlu0 %v612
  %v614 = vpop.xlane.xlu0 %613
  %v615 = vsel %vm272, %v261, 0.0
  %616 = vadd.xlane.f32.xlu0 %v615
  %v617 = vpop.xlane.xlu0 %616
  %v618 = vsel %vm272, %v262, 0.0
  %619 = vadd.xlane.f32.xlu0 %v618
  %v620 = vpop.xlane.xlu0 %619
  %v621 = vsel %vm272, %v263, 0.0
  %622 = vadd.xlane.f32.xlu0 %v621
  %v623 = vpop.xlane.xlu0 %622
  %v624 = vsel %vm272, %v264, 0.0
  %625 = vadd.xlane.f32.xlu0 %v624
  %v626 = vpop.xlane.xlu0 %625
  %v627 = vsel %vm272, %v265, 0.0
  %628 = vadd.xlane.f32.xlu0 %v627
  %v629 = vpop.xlane.xlu0 %628
  %v630 = vsel %vm272, %v266, 0.0
  %631 = vadd.xlane.f32.xlu0 %v630
  %v632 = vpop.xlane.xlu0 %631
  %v633 = vsel %vm272, %v267, 0.0
  %634 = vadd.xlane.f32.xlu0 %v633
  %v635 = vpop.xlane.xlu0 %634
  %v636 = vsel %vm272, %v268, 0.0
  %637 = vadd.xlane.f32.xlu0 %v636
  %v638 = vpop.xlane.xlu0 %637
  %v639 = vsel %vm272, %v269, 0.0
  %640 = vadd.xlane.f32.xlu0 %v639
  %v641 = vpop.xlane.xlu0 %640
  %v642 = vsel %vm272, %v270, 0.0
  %643 = vadd.xlane.f32.xlu0 %v642
  %v644 = vpop.xlane.xlu0 %643
  %v645 = vsel %vm272, %v271, 0.0
  %646 = vadd.xlane.f32.xlu0 %v645
  %v647 = vpop.xlane.xlu0 %646
  %s648 = sld [smem:[#allocation2]]
  %v649 = vstv %s648
  %v650 = vadd.f32 %v275, %v649
  %v651 = vadd.f32 %v278, %v649
  %v652 = vadd.f32 %v281, %v649
  %v653 = vadd.f32 %v284, %v649
  %v654 = vadd.f32 %v287, %v649
  %v655 = vadd.f32 %v290, %v649
  %v656 = vadd.f32 %v293, %v649
  %v657 = vadd.f32 %v296, %v649
  %v658 = vadd.f32 %v299, %v649
  %v659 = vadd.f32 %v302, %v649
  %v660 = vadd.f32 %v305, %v649
  %v661 = vadd.f32 %v308, %v649
  %v662 = vadd.f32 %v311, %v649
  %v663 = vadd.f32 %v314, %v649
  %v664 = vadd.f32 %v317, %v649
  %v665 = vadd.f32 %v320, %v649
  %v666 = vadd.f32 %v323, %v649
  %v667 = vadd.f32 %v326, %v649
  %v668 = vadd.f32 %v329, %v649
  %v669 = vadd.f32 %v332, %v649
  %v670 = vadd.f32 %v335, %v649
  %v671 = vadd.f32 %v338, %v649
  %v672 = vadd.f32 %v341, %v649
  %v673 = vadd.f32 %v344, %v649
  %v674 = vadd.f32 %v347, %v649
  %v675 = vadd.f32 %v350, %v649
  %v676 = vadd.f32 %v353, %v649
  %v677 = vadd.f32 %v356, %v649
  %v678 = vadd.f32 %v359, %v649
  %v679 = vadd.f32 %v362, %v649
  %v680 = vadd.f32 %v365, %v649
  %v681 = vadd.f32 %v368, %v649
  %v682 = vadd.f32 %v371, %v649
  %v683 = vadd.f32 %v374, %v649
  %v684 = vadd.f32 %v377, %v649
  %v685 = vadd.f32 %v380, %v649
  %v686 = vadd.f32 %v383, %v649
  %v687 = vadd.f32 %v386, %v649
  %v688 = vadd.f32 %v389, %v649
  %v689 = vadd.f32 %v392, %v649
  %v690 = vadd.f32 %v395, %v649
  %v691 = vadd.f32 %v398, %v649
  %v692 = vadd.f32 %v401, %v649
  %v693 = vadd.f32 %v404, %v649
  %v694 = vadd.f32 %v407, %v649
  %v695 = vadd.f32 %v410, %v649
  %v696 = vadd.f32 %v413, %v649
  %v697 = vadd.f32 %v416, %v649
  %v698 = vadd.f32 %v419, %v649
  %v699 = vadd.f32 %v422, %v649
  %v700 = vadd.f32 %v425, %v649
  %v701 = vadd.f32 %v428, %v649
  %v702 = vadd.f32 %v431, %v649
  %v703 = vadd.f32 %v434, %v649
  %v704 = vadd.f32 %v437, %v649
  %v705 = vadd.f32 %v440, %v649
  %v706 = vadd.f32 %v443, %v649
  %v707 = vadd.f32 %v446, %v649
  %v708 = vadd.f32 %v449, %v649
  %v709 = vadd.f32 %v452, %v649
  %v710 = vadd.f32 %v455, %v649
  %v711 = vadd.f32 %v458, %v649
  %v712 = vadd.f32 %v461, %v649
  %v713 = vadd.f32 %v464, %v649
  %v714 = vadd.f32 %v467, %v649
  %v715 = vadd.f32 %v470, %v649
  %v716 = vadd.f32 %v473, %v649
  %v717 = vadd.f32 %v476, %v649
  %v718 = vadd.f32 %v479, %v649
  %v719 = vadd.f32 %v482, %v649
  %v720 = vadd.f32 %v485, %v649
  %v721 = vadd.f32 %v488, %v649
  %v722 = vadd.f32 %v491, %v649
  %v723 = vadd.f32 %v494, %v649
  %v724 = vadd.f32 %v497, %v649
  %v725 = vadd.f32 %v500, %v649
  %v726 = vadd.f32 %v503, %v649
  %v727 = vadd.f32 %v506, %v649
  %v728 = vadd.f32 %v509, %v649
  %v729 = vadd.f32 %v512, %v649
  %v730 = vadd.f32 %v515, %v649
  %v731 = vadd.f32 %v518, %v649
  %v732 = vadd.f32 %v521, %v649
  %v733 = vadd.f32 %v524, %v649
  %v734 = vadd.f32 %v527, %v649
  %v735 = vadd.f32 %v530, %v649
  %v736 = vadd.f32 %v533, %v649
  %v737 = vadd.f32 %v536, %v649
  %v738 = vadd.f32 %v539, %v649
  %v739 = vadd.f32 %v542, %v649
  %v740 = vadd.f32 %v545, %v649
  %v741 = vadd.f32 %v548, %v649
  %v742 = vadd.f32 %v551, %v649
  %v743 = vadd.f32 %v554, %v649
  %v744 = vadd.f32 %v557, %v649
  %v745 = vadd.f32 %v560, %v649
  %v746 = vadd.f32 %v563, %v649
  %v747 = vadd.f32 %v566, %v649
  %v748 = vadd.f32 %v569, %v649
  %v749 = vadd.f32 %v572, %v649
  %v750 = vadd.f32 %v575, %v649
  %v751 = vadd.f32 %v578, %v649
  %v752 = vadd.f32 %v581, %v649
  %v753 = vadd.f32 %v584, %v649
  %v754 = vadd.f32 %v587, %v649
  %v755 = vadd.f32 %v590, %v649
  %v756 = vadd.f32 %v593, %v649
  %v757 = vadd.f32 %v596, %v649
  %v758 = vadd.f32 %v599, %v649
  %v759 = vadd.f32 %v602, %v649
  %v760 = vadd.f32 %v605, %v649
  %v761 = vadd.f32 %v608, %v649
  %v762 = vadd.f32 %v611, %v649
  %v763 = vadd.f32 %v614, %v649
  %v764 = vadd.f32 %v617, %v649
  %v765 = vadd.f32 %v620, %v649
  %v766 = vadd.f32 %v623, %v649
  %v767 = vadd.f32 %v626, %v649
  %v768 = vadd.f32 %v629, %v649
  %v769 = vadd.f32 %v632, %v649
  %v770 = vadd.f32 %v635, %v649
  %v771 = vadd.f32 %v638, %v649
  %v772 = vadd.f32 %v641, %v649
  %v773 = vadd.f32 %v644, %v649
  %v774 = vadd.f32 %v647, %v649
  %v775 = vmax.f32 %v650, 0.0
  %v776 = vmax.f32 %v651, 0.0
  %v777 = vmax.f32 %v652, 0.0
  %v778 = vmax.f32 %v653, 0.0
  %v779 = vmax.f32 %v654, 0.0
  %v780 = vmax.f32 %v655, 0.0
  %v781 = vmax.f32 %v656, 0.0
  %v782 = vmax.f32 %v657, 0.0
  %v783 = vmax.f32 %v658, 0.0
  %v784 = vmax.f32 %v659, 0.0
  %v785 = vmax.f32 %v660, 0.0
  %v786 = vmax.f32 %v661, 0.0
  %v787 = vmax.f32 %v662, 0.0
  %v788 = vmax.f32 %v663, 0.0
  %v789 = vmax.f32 %v664, 0.0
  %v790 = vmax.f32 %v665, 0.0
  %v791 = vmax.f32 %v666, 0.0
  %v792 = vmax.f32 %v667, 0.0
  %v793 = vmax.f32 %v668, 0.0
  %v794 = vmax.f32 %v669, 0.0
  %v795 = vmax.f32 %v670, 0.0
  %v796 = vmax.f32 %v671, 0.0
  %v797 = vmax.f32 %v672, 0.0
  %v798 = vmax.f32 %v673, 0.0
  %v799 = vmax.f32 %v674, 0.0
  %v800 = vmax.f32 %v675, 0.0
  %v801 = vmax.f32 %v676, 0.0
  %v802 = vmax.f32 %v677, 0.0
  %v803 = vmax.f32 %v678, 0.0
  %v804 = vmax.f32 %v679, 0.0
  %v805 = vmax.f32 %v680, 0.0
  %v806 = vmax.f32 %v681, 0.0
  %v807 = vmax.f32 %v682, 0.0
  %v808 = vmax.f32 %v683, 0.0
  %v809 = vmax.f32 %v684, 0.0
  %v810 = vmax.f32 %v685, 0.0
  %v811 = vmax.f32 %v686, 0.0
  %v812 = vmax.f32 %v687, 0.0
  %v813 = vmax.f32 %v688, 0.0
  %v814 = vmax.f32 %v689, 0.0
  %v815 = vmax.f32 %v690, 0.0
  %v816 = vmax.f32 %v691, 0.0
  %v817 = vmax.f32 %v692, 0.0
  %v818 = vmax.f32 %v693, 0.0
  %v819 = vmax.f32 %v694, 0.0
  %v820 = vmax.f32 %v695, 0.0
  %v821 = vmax.f32 %v696, 0.0
  %v822 = vmax.f32 %v697, 0.0
  %v823 = vmax.f32 %v698, 0.0
  %v824 = vmax.f32 %v699, 0.0
  %v825 = vmax.f32 %v700, 0.0
  %v826 = vmax.f32 %v701, 0.0
  %v827 = vmax.f32 %v702, 0.0
  %v828 = vmax.f32 %v703, 0.0
  %v829 = vmax.f32 %v704, 0.0
  %v830 = vmax.f32 %v705, 0.0
  %v831 = vmax.f32 %v706, 0.0
  %v832 = vmax.f32 %v707, 0.0
  %v833 = vmax.f32 %v708, 0.0
  %v834 = vmax.f32 %v709, 0.0
  %v835 = vmax.f32 %v710, 0.0
  %v836 = vmax.f32 %v711, 0.0
  %v837 = vmax.f32 %v712, 0.0
  %v838 = vmax.f32 %v713, 0.0
  %v839 = vmax.f32 %v714, 0.0
  %v840 = vmax.f32 %v715, 0.0
  %v841 = vmax.f32 %v716, 0.0
  %v842 = vmax.f32 %v717, 0.0
  %v843 = vmax.f32 %v718, 0.0
  %v844 = vmax.f32 %v719, 0.0
  %v845 = vmax.f32 %v720, 0.0
  %v846 = vmax.f32 %v721, 0.0
  %v847 = vmax.f32 %v722, 0.0
  %v848 = vmax.f32 %v723, 0.0
  %v849 = vmax.f32 %v724, 0.0
  %v850 = vmax.f32 %v725, 0.0
  %v851 = vmax.f32 %v726, 0.0
  %v852 = vmax.f32 %v727, 0.0
  %v853 = vmax.f32 %v728, 0.0
  %v854 = vmax.f32 %v729, 0.0
  %v855 = vmax.f32 %v730, 0.0
  %v856 = vmax.f32 %v731, 0.0
  %v857 = vmax.f32 %v732, 0.0
  %v858 = vmax.f32 %v733, 0.0
  %v859 = vmax.f32 %v734, 0.0
  %v860 = vmax.f32 %v735, 0.0
  %v861 = vmax.f32 %v736, 0.0
  %v862 = vmax.f32 %v737, 0.0
  %v863 = vmax.f32 %v738, 0.0
  %v864 = vmax.f32 %v739, 0.0
  %v865 = vmax.f32 %v740, 0.0
  %v866 = vmax.f32 %v741, 0.0
  %v867 = vmax.f32 %v742, 0.0
  %v868 = vmax.f32 %v743, 0.0
  %v869 = vmax.f32 %v744, 0.0
  %v870 = vmax.f32 %v745, 0.0
  %v871 = vmax.f32 %v746, 0.0
  %v872 = vmax.f32 %v747, 0.0
  %v873 = vmax.f32 %v748, 0.0
  %v874 = vmax.f32 %v749, 0.0
  %v875 = vmax.f32 %v750, 0.0
  %v876 = vmax.f32 %v751, 0.0
  %v877 = vmax.f32 %v752, 0.0
  %v878 = vmax.f32 %v753, 0.0
  %v879 = vmax.f32 %v754, 0.0
  %v880 = vmax.f32 %v755, 0.0
  %v881 = vmax.f32 %v756, 0.0
  %v882 = vmax.f32 %v757, 0.0
  %v883 = vmax.f32 %v758, 0.0
  %v884 = vmax.f32 %v759, 0.0
  %v885 = vmax.f32 %v760, 0.0
  %v886 = vmax.f32 %v761, 0.0
  %v887 = vmax.f32 %v762, 0.0
  %v888 = vmax.f32 %v763, 0.0
  %v889 = vmax.f32 %v764, 0.0
  %v890 = vmax.f32 %v765, 0.0
  %v891 = vmax.f32 %v766, 0.0
  %v892 = vmax.f32 %v767, 0.0
  %v893 = vmax.f32 %v768, 0.0
  %v894 = vmax.f32 %v769, 0.0
  %v895 = vmax.f32 %v770, 0.0
  %v896 = vmax.f32 %v771, 0.0
  %v897 = vmax.f32 %v772, 0.0
  %v898 = vmax.f32 %v773, 0.0
  %v899 = vmax.f32 %v774, 0.0
  %vm900 = vcmask 7168
  %901 = vst.msk [vmem:[%s3] sm:$0xff] %vm900, %v775
  %902 = vst.msk [vmem:[%s3 + $0x8] sm:$0xff] %vm900, %v776
  %903 = vst.msk [vmem:[%s3 + $0x10] sm:$0xff] %vm900, %v777
  %904 = vst.msk [vmem:[%s3 + $0x18] sm:$0xff] %vm900, %v778
  %905 = vst.msk [vmem:[%s3 + $0x20] sm:$0xff] %vm900, %v779
  %906 = vst.msk [vmem:[%s3 + $0x28] sm:$0xff] %vm900, %v780
  %907 = vst.msk [vmem:[%s3 + $0x30] sm:$0xff] %vm900, %v781
  %908 = vst.msk [vmem:[%s3 + $0x38] sm:$0xff] %vm900, %v782
  %909 = vst.msk [vmem:[%s3 + $0x40] sm:$0xff] %vm900, %v783
  %910 = vst.msk [vmem:[%s3 + $0x48] sm:$0xff] %vm900, %v784
  %911 = vst.msk [vmem:[%s3 + $0x50] sm:$0xff] %vm900, %v785
  %912 = vst.msk [vmem:[%s3 + $0x58] sm:$0xff] %vm900, %v786
  %913 = vst.msk [vmem:[%s3 + $0x60] sm:$0xff] %vm900, %v787
  %914 = vst.msk [vmem:[%s3 + $0x68] sm:$0xff] %vm900, %v788
  %915 = vst.msk [vmem:[%s3 + $0x70] sm:$0xff] %vm900, %v789
  %916 = vst.msk [vmem:[%s3 + $0x78] sm:$0xff] %vm900, %v790
  %917 = vst.msk [vmem:[%s3 + $0x80] sm:$0xff] %vm900, %v791
  %918 = vst.msk [vmem:[%s3 + $0x88] sm:$0xff] %vm900, %v792
  %919 = vst.msk [vmem:[%s3 + $0x90] sm:$0xff] %vm900, %v793
  %920 = vst.msk [vmem:[%s3 + $0x98] sm:$0xff] %vm900, %v794
  %921 = vst.msk [vmem:[%s3 + $0xa0] sm:$0xff] %vm900, %v795
  %922 = vst.msk [vmem:[%s3 + $0xa8] sm:$0xff] %vm900, %v796
  %923 = vst.msk [vmem:[%s3 + $0xb0] sm:$0xff] %vm900, %v797
  %924 = vst.msk [vmem:[%s3 + $0xb8] sm:$0xff] %vm900, %v798
  %925 = vst.msk [vmem:[%s3 + $0xc0] sm:$0xff] %vm900, %v799
  %926 = vst.msk [vmem:[%s3 + $0xc8] sm:$0xff] %vm900, %v800
  %927 = vst.msk [vmem:[%s3 + $0xd0] sm:$0xff] %vm900, %v801
  %928 = vst.msk [vmem:[%s3 + $0xd8] sm:$0xff] %vm900, %v802
  %929 = vst.msk [vmem:[%s3 + $0xe0] sm:$0xff] %vm900, %v803
  %930 = vst.msk [vmem:[%s3 + $0xe8] sm:$0xff] %vm900, %v804
  %931 = vst.msk [vmem:[%s3 + $0xf0] sm:$0xff] %vm900, %v805
  %932 = vst.msk [vmem:[%s3 + $0xf8] sm:$0xff] %vm900, %v806
  %933 = vst.msk [vmem:[%s3 + $0x100] sm:$0xff] %vm900, %v807
  %934 = vst.msk [vmem:[%s3 + $0x108] sm:$0xff] %vm900, %v808
  %935 = vst.msk [vmem:[%s3 + $0x110] sm:$0xff] %vm900, %v809
  %936 = vst.msk [vmem:[%s3 + $0x118] sm:$0xff] %vm900, %v810
  %937 = vst.msk [vmem:[%s3 + $0x120] sm:$0xff] %vm900, %v811
  %938 = vst.msk [vmem:[%s3 + $0x128] sm:$0xff] %vm900, %v812
  %939 = vst.msk [vmem:[%s3 + $0x130] sm:$0xff] %vm900, %v813
  %940 = vst.msk [vmem:[%s3 + $0x138] sm:$0xff] %vm900, %v814
  %941 = vst.msk [vmem:[%s3 + $0x140] sm:$0xff] %vm900, %v815
  %942 = vst.msk [vmem:[%s3 + $0x148] sm:$0xff] %vm900, %v816
  %943 = vst.msk [vmem:[%s3 + $0x150] sm:$0xff] %vm900, %v817
  %944 = vst.msk [vmem:[%s3 + $0x158] sm:$0xff] %vm900, %v818
  %945 = vst.msk [vmem:[%s3 + $0x160] sm:$0xff] %vm900, %v819
  %946 = vst.msk [vmem:[%s3 + $0x168] sm:$0xff] %vm900, %v820
  %947 = vst.msk [vmem:[%s3 + $0x170] sm:$0xff] %vm900, %v821
  %948 = vst.msk [vmem:[%s3 + $0x178] sm:$0xff] %vm900, %v822
  %949 = vst.msk [vmem:[%s3 + $0x180] sm:$0xff] %vm900, %v823
  %950 = vst.msk [vmem:[%s3 + $0x188] sm:$0xff] %vm900, %v824
  %951 = vst.msk [vmem:[%s3 + $0x190] sm:$0xff] %vm900, %v825
  %952 = vst.msk [vmem:[%s3 + $0x198] sm:$0xff] %vm900, %v826
  %953 = vst.msk [vmem:[%s3 + $0x1a0] sm:$0xff] %vm900, %v827
  %954 = vst.msk [vmem:[%s3 + $0x1a8] sm:$0xff] %vm900, %v828
  %955 = vst.msk [vmem:[%s3 + $0x1b0] sm:$0xff] %vm900, %v829
  %956 = vst.msk [vmem:[%s3 + $0x1b8] sm:$0xff] %vm900, %v830
  %957 = vst.msk [vmem:[%s3 + $0x1c0] sm:$0xff] %vm900, %v831
  %958 = vst.msk [vmem:[%s3 + $0x1c8] sm:$0xff] %vm900, %v832
  %959 = vst.msk [vmem:[%s3 + $0x1d0] sm:$0xff] %vm900, %v833
  %960 = vst.msk [vmem:[%s3 + $0x1d8] sm:$0xff] %vm900, %v834
  %961 = vst.msk [vmem:[%s3 + $0x1e0] sm:$0xff] %vm900, %v835
  %962 = vst.msk [vmem:[%s3 + $0x1e8] sm:$0xff] %vm900, %v836
  %963 = vst.msk [vmem:[%s3 + $0x1f0] sm:$0xff] %vm900, %v837
  %964 = vst.msk [vmem:[%s3 + $0x1f8] sm:$0xff] %vm900, %v838
  %965 = vst.msk [vmem:[%s3 + $0x200] sm:$0xff] %vm900, %v839
  %966 = vst.msk [vmem:[%s3 + $0x208] sm:$0xff] %vm900, %v840
  %967 = vst.msk [vmem:[%s3 + $0x210] sm:$0xff] %vm900, %v841
  %968 = vst.msk [vmem:[%s3 + $0x218] sm:$0xff] %vm900, %v842
  %969 = vst.msk [vmem:[%s3 + $0x220] sm:$0xff] %vm900, %v843
  %970 = vst.msk [vmem:[%s3 + $0x228] sm:$0xff] %vm900, %v844
  %971 = vst.msk [vmem:[%s3 + $0x230] sm:$0xff] %vm900, %v845
  %972 = vst.msk [vmem:[%s3 + $0x238] sm:$0xff] %vm900, %v846
  %973 = vst.msk [vmem:[%s3 + $0x240] sm:$0xff] %vm900, %v847
  %974 = vst.msk [vmem:[%s3 + $0x248] sm:$0xff] %vm900, %v848
  %975 = vst.msk [vmem:[%s3 + $0x250] sm:$0xff] %vm900, %v849
  %976 = vst.msk [vmem:[%s3 + $0x258] sm:$0xff] %vm900, %v850
  %977 = vst.msk [vmem:[%s3 + $0x260] sm:$0xff] %vm900, %v851
  %978 = vst.msk [vmem:[%s3 + $0x268] sm:$0xff] %vm900, %v852
  %979 = vst.msk [vmem:[%s3 + $0x270] sm:$0xff] %vm900, %v853
  %980 = vst.msk [vmem:[%s3 + $0x278] sm:$0xff] %vm900, %v854
  %981 = vst.msk [vmem:[%s3 + $0x280] sm:$0xff] %vm900, %v855
  %982 = vst.msk [vmem:[%s3 + $0x288] sm:$0xff] %vm900, %v856
  %983 = vst.msk [vmem:[%s3 + $0x290] sm:$0xff] %vm900, %v857
  %984 = vst.msk [vmem:[%s3 + $0x298] sm:$0xff] %vm900, %v858
  %985 = vst.msk [vmem:[%s3 + $0x2a0] sm:$0xff] %vm900, %v859
  %986 = vst.msk [vmem:[%s3 + $0x2a8] sm:$0xff] %vm900, %v860
  %987 = vst.msk [vmem:[%s3 + $0x2b0] sm:$0xff] %vm900, %v861
  %988 = vst.msk [vmem:[%s3 + $0x2b8] sm:$0xff] %vm900, %v862
  %989 = vst.msk [vmem:[%s3 + $0x2c0] sm:$0xff] %vm900, %v863
  %990 = vst.msk [vmem:[%s3 + $0x2c8] sm:$0xff] %vm900, %v864
  %991 = vst.msk [vmem:[%s3 + $0x2d0] sm:$0xff] %vm900, %v865
  %992 = vst.msk [vmem:[%s3 + $0x2d8] sm:$0xff] %vm900, %v866
  %993 = vst.msk [vmem:[%s3 + $0x2e0] sm:$0xff] %vm900, %v867
  %994 = vst.msk [vmem:[%s3 + $0x2e8] sm:$0xff] %vm900, %v868
  %995 = vst.msk [vmem:[%s3 + $0x2f0] sm:$0xff] %vm900, %v869
  %996 = vst.msk [vmem:[%s3 + $0x2f8] sm:$0xff] %vm900, %v870
  %997 = vst.msk [vmem:[%s3 + $0x300] sm:$0xff] %vm900, %v871
  %998 = vst.msk [vmem:[%s3 + $0x308] sm:$0xff] %vm900, %v872
  %999 = vst.msk [vmem:[%s3 + $0x310] sm:$0xff] %vm900, %v873
  %1000 = vst.msk [vmem:[%s3 + $0x318] sm:$0xff] %vm900, %v874
  %1001 = vst.msk [vmem:[%s3 + $0x320] sm:$0xff] %vm900, %v875
  %1002 = vst.msk [vmem:[%s3 + $0x328] sm:$0xff] %vm900, %v876
  %1003 = vst.msk [vmem:[%s3 + $0x330] sm:$0xff] %vm900, %v877
  %1004 = vst.msk [vmem:[%s3 + $0x338] sm:$0xff] %vm900, %v878
  %1005 = vst.msk [vmem:[%s3 + $0x340] sm:$0xff] %vm900, %v879
  %1006 = vst.msk [vmem:[%s3 + $0x348] sm:$0xff] %vm900, %v880
  %1007 = vst.msk [vmem:[%s3 + $0x350] sm:$0xff] %vm900, %v881
  %1008 = vst.msk [vmem:[%s3 + $0x358] sm:$0xff] %vm900, %v882
  %1009 = vst.msk [vmem:[%s3 + $0x360] sm:$0xff] %vm900, %v883
  %1010 = vst.msk [vmem:[%s3 + $0x368] sm:$0xff] %vm900, %v884
  %1011 = vst.msk [vmem:[%s3 + $0x370] sm:$0xff] %vm900, %v885
  %1012 = vst.msk [vmem:[%s3 + $0x378] sm:$0xff] %vm900, %v886
  %1013 = vst.msk [vmem:[%s3 + $0x380] sm:$0xff] %vm900, %v887
  %1014 = vst.msk [vmem:[%s3 + $0x388] sm:$0xff] %vm900, %v888
  %1015 = vst.msk [vmem:[%s3 + $0x390] sm:$0xff] %vm900, %v889
  %1016 = vst.msk [vmem:[%s3 + $0x398] sm:$0xff] %vm900, %v890
  %1017 = vst.msk [vmem:[%s3 + $0x3a0] sm:$0xff] %vm900, %v891
  %1018 = vst.msk [vmem:[%s3 + $0x3a8] sm:$0xff] %vm900, %v892
  %1019 = vst.msk [vmem:[%s3 + $0x3b0] sm:$0xff] %vm900, %v893
  %1020 = vst.msk [vmem:[%s3 + $0x3b8] sm:$0xff] %vm900, %v894
  %1021 = vst.msk [vmem:[%s3 + $0x3c0] sm:$0xff] %vm900, %v895
  %1022 = vst.msk [vmem:[%s3 + $0x3c8] sm:$0xff] %vm900, %v896
  %1023 = vst.msk [vmem:[%s3 + $0x3d0] sm:$0xff] %vm900, %v897
  %1024 = vst.msk [vmem:[%s3 + $0x3d8] sm:$0xff] %vm900, %v898
  %1025 = vst.msk [vmem:[%s3 + $0x3e0] sm:$0xff] %vm900, %v899
  // Predicated region
  $region14: #{tpu_custom_call.1} parent=0 // pred_check
    _
  $region15: #{tpu_custom_call.1} parent=0 // pred_check_branch
    %1027 = sbr.rel (0) target = $region17
  $region16: #{tpu_custom_call.1} parent=0 // pred_region
    _
  $region17: #{tpu_custom_call.1} parent=0 // pred_fallthru
    _
  // Predicated region
  $region18: #{tpu_custom_call.1} parent=0 // pred_check
    _
  $region19: #{tpu_custom_call.1} parent=0 // pred_check_branch
    %1029 = sbr.rel (0) target = $region21
  $region20: #{tpu_custom_call.1} parent=0 // pred_region
    _
  $region21: #{tpu_custom_call.1} parent=0 // pred_fallthru
    _

</llo_original>
